<compile_context>
chip_gen: v5e
topology: v5e:2x2
jax: 0.10.0
libtpu: 0.0.40
codegen_flags: <defaults>
</compile_context>

<pallas_src>
import jax
import jax.numpy as jnp
from jax.experimental import pallas as pl
from jax.experimental.pallas import tpu as pltpu


def _round_up(x, m):
    return ((x + m - 1) // m) * m


def _padded_row_bytes(c, w):
    """f32 bytes per H-row of one grid step's in+out VMEM blocks, including
    128-lane padding of the (C, th, W) input tile and the (th, 2CW) output."""
    return 4 * (c * _round_up(w, 128) + _round_up(2 * c * w, 128))


def _choose_th(n, c, h, w, *, target_block_bytes=4 << 20, min_total_steps=8):
    """Pick the H-tile: divides H, is a multiple of 8 (or == H), keeps the
    per-step (in+out) block under ~target_block_bytes after lane padding, and
    gives the grid enough steps to pipeline DMA / balance v7x megacore."""
    per_row = _padded_row_bytes(c, w)
    cands = sorted({t for t in range(8, h + 1, 8) if h % t == 0} | {h})
    fit = [t for t in cands if t * per_row <= target_block_bytes]
    if not fit:
        return min(cands)                       # even the smallest tile is big
    good = [t for t in fit if n * (h // t) >= min_total_steps]
    if good:
        return max(good)                        # biggest tile with enough steps
    # Array too small to reach min_total_steps at the byte target: trade block
    # size for step count, but keep each step above a small floor.
    floor = 256 << 10
    small = [t for t in fit if t * per_row >= floor]
    return min(small) if small else min(fit)


def _make_kernel(c, w):
    """Kernel specialized for (C, W). x_ref: (C, th, W); o_ref: (th, 2*C*W)."""
    cw = c * w

    if w % 128 == 0:
        # Channel slabs are already lane-dense and 128-aligned: per-channel
        # copies into the flattened output row slab; every store is a
        # full-width, unmasked, 128-aligned vst (no (th, 2C, W) strided path).
        def kernel(x_ref, o_ref):
            for ci in range(c):                  # static trace-time loop
                v = x_ref[ci] * 0.5              # (th, W), lane-preserving
                o_ref[:, ci * w:(ci + 1) * w] = v
                o_ref[:, cw + ci * w:cw + (ci + 1) * w] = v
        return kernel

    # W not a lane multiple: assemble the output row slab in 128-lane-aligned
    # column groups of g = 128//W channels (fall back to the whole half when W
    # does not divide 128), multiply once, and store each group twice.
    # TODO(synk): if bundle dumps show the per-group lane rotate/selects (~128/W
    # per output vreg) binding on v7x, switch to a lane-dense (C, th*W) load
    # with a VMEM relayout instead of lane assembly.
    g = min(c, 128 // w) if (128 % w == 0) else c

    def kernel(x_ref, o_ref):
        k = 0
        while k < c:                             # static trace-time loop
            gg = min(g, c - k)
            if gg == 1:
                grp = x_ref[k] * 0.5
            else:
                grp = jnp.concatenate(
                    [x_ref[k + i] for i in range(gg)], axis=-1) * 0.5
            lo, hi = k * w, (k + gg) * w
            o_ref[:, lo:hi] = grp                # first half of cat((x, x), 1)
            o_ref[:, cw + lo:cw + hi] = grp      # second half: re-store same vregs
            k += gg

    return kernel


def concat_cast_flatten(x, *, h_tile=None):
    """x: (N, C, H, W) float32. Returns (N, H*2*C*W) float32, matching
    torch: flatten(transpose(cat((x, x), 1) / 2, 1, 2), 1)."""
    x = x.astype(jnp.float32)
    n, c, h, w = x.shape
    th = h_tile if h_tile is not None else _choose_th(n, c, h, w)
    assert h % th == 0 and (th % 8 == 0 or th == h)
    n_h_tiles = h // th

    out_shape = jax.ShapeDtypeStruct((n, h, 2 * c * w), jnp.float32)
    out_spec = pl.BlockSpec((pl.Squeezed(), th, 2 * c * w),
                            lambda i, j: (i, j, 0))
    # TODO(synk): for W << 128 this (C, th, W) block DMAs W*4-byte rows into a
    # lane-padded tile (small HBM segments). The lane-dense alternative
    # (input reshaped to (N, C, H*W) + in-kernel relayout) trades DMA
    # descriptor size for vld/vst+XLU work; switch only after measuring
    # achieved read bandwidth vs roofline.
    in_spec = pl.BlockSpec((pl.Squeezed(), c, th, w),
                           lambda i, j: (i, 0, j, 0))
    # TODO(synk): sweep pipeline_mode=pl.Buffered(3) on in_spec for small
    # per-step blocks once the target jax version is confirmed to accept it.

    # Double-buffered in+out footprint, using lane-padded tile sizes.
    db_bytes = 2 * th * _padded_row_bytes(c, w)
    try:
        vmem_cap = int(pltpu.get_tpu_info().vmem_capacity_bytes)
    except Exception:
        vmem_cap = 64 << 20            # conservative default (v7x per-TC size)
    # Never request the whole per-core VMEM: leave >=25% headroom for
    # compiler-internal scratch, DMA descriptors and relayout buffers.
    vmem_limit = int(min(vmem_cap * 3 // 4, max(32 << 20, 2 * db_bytes)))

    kernel = _make_kernel(c, w)
    out = pl.pallas_call(
        kernel,
        out_shape=out_shape,
        grid_spec=pltpu.PrefetchScalarGridSpec(
            num_scalar_prefetch=0,
            grid=(n, n_h_tiles),
            in_specs=[in_spec],
            out_specs=out_spec,
        ),
        compiler_params=pltpu.CompilerParams(
            dimension_semantics=("parallel", "parallel"),
            vmem_limit_bytes=vmem_limit,
        ),
        # Pure-bandwidth op: read 4*N*C*H*W bytes, write 8*N*C*H*W bytes,
        # one multiply per input element.
        cost_estimate=pl.CostEstimate(
            flops=n * c * h * w,
            transcendentals=0,
            bytes_accessed=12 * n * c * h * w,
        ),
    )(x)
    # flatten(xt, 1): pure reshape glue, element order already correct.
    return out.reshape(n, h * 2 * c * w)


if __name__ == "__main__":
    key = jax.random.PRNGKey(0)
    N, C, H, W = 2, 4, 16, 16
    x = jax.random.normal(key, (N, C, H, W), dtype=jnp.float32)

    y = jax.block_until_ready(concat_cast_flatten(x))

    # Pure-JAX reference of the PyTorch forward.
    xc = jnp.concatenate((x, x), axis=1)
    # NOTE: xc.type(torch.IntTensor) in the reference is dead code (overwritten).
    xt = jnp.transpose(xc / 2.0, (0, 2, 1, 3))
    ref = xt.reshape(N, -1)

    assert y.shape == (N, H * 2 * C * W)
    assert jnp.allclose(y, ref, atol=1e-6), "mismatch vs reference"
    print("KERNEL_OK")
</pallas_src>

<mosaic_0001>
module attributes {stable_mosaic.version = 11 : i64} {
  func.func @kernel(%arg0: i32, %arg1: i32, %arg2: memref<1x4x8x16xf32, #tpu.memory_space<vmem>>, %arg3: memref<1x8x128xf32, #tpu.memory_space<vmem>>) attributes {dimension_semantics = [#tpu.dimension_semantics<parallel>, #tpu.dimension_semantics<parallel>], iteration_bounds = array<i64: 2, 2>, scalar_prefetch = 0 : i64, scratch_operands = 0 : i64, tpu.core_type = #tpu.core_type<tc>, window_params = [{transform_indices = @transform_0, window_bounds = array<i64: 1, 4, 8, 16>}, {transform_indices = @transform_1, window_bounds = array<i64: 1, 8, 128>}]} {
    %c0 = arith.constant 0 : index
    %c0_0 = arith.constant 0 : index
    %c0_1 = arith.constant 0 : index
    %c0_2 = arith.constant 0 : index
    %0 = vector.load %arg2[%c0, %c0_0, %c0_1, %c0_2] : memref<1x4x8x16xf32, #tpu.memory_space<vmem>>, vector<1x1x8x16xf32>
    %1 = vector.shape_cast %0 : vector<1x1x8x16xf32> to vector<8x16xf32>
    %c0_3 = arith.constant 0 : index
    %c1 = arith.constant 1 : index
    %c0_4 = arith.constant 0 : index
    %c0_5 = arith.constant 0 : index
    %2 = vector.load %arg2[%c0_3, %c1, %c0_4, %c0_5] : memref<1x4x8x16xf32, #tpu.memory_space<vmem>>, vector<1x1x8x16xf32>
    %3 = vector.shape_cast %2 : vector<1x1x8x16xf32> to vector<8x16xf32>
    %c0_6 = arith.constant 0 : index
    %c2 = arith.constant 2 : index
    %c0_7 = arith.constant 0 : index
    %c0_8 = arith.constant 0 : index
    %4 = vector.load %arg2[%c0_6, %c2, %c0_7, %c0_8] : memref<1x4x8x16xf32, #tpu.memory_space<vmem>>, vector<1x1x8x16xf32>
    %5 = vector.shape_cast %4 : vector<1x1x8x16xf32> to vector<8x16xf32>
    %c0_9 = arith.constant 0 : index
    %c3 = arith.constant 3 : index
    %c0_10 = arith.constant 0 : index
    %c0_11 = arith.constant 0 : index
    %6 = vector.load %arg2[%c0_9, %c3, %c0_10, %c0_11] : memref<1x4x8x16xf32, #tpu.memory_space<vmem>>, vector<1x1x8x16xf32>
    %7 = vector.shape_cast %6 : vector<1x1x8x16xf32> to vector<8x16xf32>
    %8 = tpu.concatenate %1, %3, %5, %7 in 1 : vector<8x16xf32>, vector<8x16xf32>, vector<8x16xf32>, vector<8x16xf32> -> vector<8x64xf32>
    %cst = arith.constant 5.000000e-01 : f32
    %9 = vector.broadcast %cst : f32 to vector<8x64xf32>
    %10 = arith.mulf %8, %9 : vector<8x64xf32>
    %c0_12 = arith.constant 0 : index
    %c0_13 = arith.constant 0 : index
    %c0_14 = arith.constant 0 : index
    %11 = vector.load %arg3[%c0_12, %c0_13, %c0_14] : memref<1x8x128xf32, #tpu.memory_space<vmem>>, vector<1x8x64xf32>
    %12 = vector.shape_cast %11 : vector<1x8x64xf32> to vector<8x64xf32>
    %13 = vector.shape_cast %10 : vector<8x64xf32> to vector<1x8x64xf32>
    tpu.vector_store %arg3[%c0_12, %c0_13, %c0_14], %13 {strides = array<i32>} : memref<1x8x128xf32, #tpu.memory_space<vmem>>, vector<1x8x64xf32>,
    %c0_15 = arith.constant 0 : index
    %c0_16 = arith.constant 0 : index
    %c64 = arith.constant 64 : index
    %14 = vector.load %arg3[%c0_15, %c0_16, %c64] : memref<1x8x128xf32, #tpu.memory_space<vmem>>, vector<1x8x64xf32>
    %15 = vector.shape_cast %14 : vector<1x8x64xf32> to vector<8x64xf32>
    %16 = vector.shape_cast %10 : vector<8x64xf32> to vector<1x8x64xf32>
    tpu.vector_store %arg3[%c0_15, %c0_16, %c64], %16 {strides = array<i32>} : memref<1x8x128xf32, #tpu.memory_space<vmem>>, vector<1x8x64xf32>,
    return
  }
  func.func @transform_0(%arg0: i32, %arg1: i32) -> (i32, i32, i32, i32) {
    %c0_i32 = arith.constant 0 : i32
    %c0_i32_0 = arith.constant 0 : i32
    %c0_i32_1 = arith.constant 0 : i32
    return %arg0, %c0_i32, %arg1, %c0_i32_0 : i32, i32, i32, i32
  }
  func.func @transform_1(%arg0: i32, %arg1: i32) -> (i32, i32, i32) {
    %c0_i32 = arith.constant 0 : i32
    %c0_i32_0 = arith.constant 0 : i32
    return %arg0, %arg1, %c0_i32 : i32, i32, i32
  }
}

</mosaic_0001>

<llo_original>
// kernel: tpu_custom_call.1
$region0: #{tpu_custom_call.1}
  #allocation0 [shape = 'u32[]', space=smem, size = 0x4, offset = 0x4, fixed_abs, tag = 'smem constant byte address 0x4 - core index']
  #allocation1 [shape = 'u32[72,128]{1,0:T(1,128)}', space=vmem, size = 0x9000, scoped, tag = 'internal scratch']
  %s0 = inlined_call_operand.hbm [shape: f32[2,4,16,16], index: 0, kind: input, shape index: {}]
  %s1 = inlined_call_operand.hbm [shape: f32[2,16,128], index: 1, kind: output, shape index: {}]
  %s2 = sld [smem:[#allocation0]]
  $region41: #{tpu_custom_call.1} parent=0
    _
  %s4 = ssub.s32 1, %s2
  %s5 = scalar_select 0, %s4, %s2
  $region1: #{tpu_custom_call.1} parent=0
    #allocation2 [shape = 'u8[32768]{0}', space=vmem, size = 0x8000, scoped, tag = 'input window, operand 0']
    #allocation3 [shape = 's32[2]{0}', space=sflag, size = 0x8, scoped, tag = 'scoped memory for tpu_custom_call.1']
    #allocation4 [shape = 's32[2]{0}', space=sflag, size = 0x8, scoped, tag = 'scoped memory for tpu_custom_call.1']
    #allocation5 [shape = 'u8[8192]{0}', space=vmem, size = 0x2000, scoped, tag = 'output window, operand 0']
    %6 = vsyncpa [#allocation3], 0
    %s7 = scalar_lea.sflag [#allocation3], 1
    %8 = vsyncpa %s7, 0
    %9 = vsyncpa [#allocation4], 0
    %s10 = scalar_lea.sflag [#allocation4], 1
    %11 = vsyncpa %s10, 0
    loop: start=0, step=1, limit=6
    $region2: #{tpu_custom_call.1} parent=1 // loop_pre_header
      _
    $region3: #{tpu_custom_call.1} parent=1 // loop_header
      %s13 = sphi 0, %s17
      %p14 = scmp.ge.s32.totalorder %s13, 6
      %s20 = sphi 0, %s32
      %s21 = sphi 0, %s28
      %s22 = sphi 0, %s20
      %s23 = sphi 0, %s21
      %s24 = sphi 0, %s22
      %s25 = sphi 0, %s23
      %s37 = sphi 0, %s39
      %s40 = sphi 0, %s37
      %s41 = sphi 0, %s40
      %s57 = sphi 0, %s41
      %s65 = sphi 0, %s67
      %s68 = sphi 0, %s65
      %s69 = sphi 0, %s68
      %s85 = sphi 0, %s69
    $region4: #{tpu_custom_call.1} parent=1 // loop_header_branch
      %16 = sbr.rel (%p14) target = $region8
    $region5: #{tpu_custom_call.1} parent=1 // loop_body
      %s18 = ssub.s32 %s13, 1
      %s19 = ssub.s32 %s13, 2
      %s26 = sadd.s32 1, %s21
      %p27 = scmp.ge.s32.totalorder %s26, 2
      %s28 = scalar_select %p27, 0, %s26
      %s29 = sadd.s32 1, %s20
      %s30 = scalar_select %p27, %s29, %s20
      %p31 = scmp.ge.s32.totalorder %s30, 2
      %s32 = scalar_select %p31, 0, %s30
      %s33 = ssub.s32 %s20, %s32
      %s34 = ssub.s32 %s21, %s28
      %s35 = sor.u32 %s33, %s34
      %p36 = scmp.eq.s32.totalorder %s35, 0
      %s38 = sadd.s32 %s37, 1
      %s39 = scalar_select %p36, %s37, %s38
      %p42 = pneg %p36
      %p43 = scmp.eq.s32.totalorder %s13, 3
      %p44 = por %p42, %p43
      %p45 = scmp.ne.s32.totalorder %s37, %s40
      %p46 = scmp.eq.s32.totalorder %s13, 0
      %p47 = por %p45, %p46
      %p48 = scmp.ne.s32.totalorder %s37, %s40
      %p49 = scmp.eq.s32.totalorder %s18, 3
      %p50 = por %p48, %p49
      %p51 = scmp.ne.s32.totalorder %s40, %s41
      %p52 = scmp.eq.s32.totalorder %s18, 0
      %p53 = por %p51, %p52
      %p54 = scmp.ne.s32.totalorder %s40, %s41
      %p55 = scmp.eq.s32.totalorder %s19, 3
      %p56 = por %p54, %p55
      %p58 = scmp.ne.s32.totalorder %s41, %s57
      %p59 = scmp.eq.s32.totalorder %s19, 0
      %p60 = por %p58, %p59
      %s61 = ssub.s32 %s20, %s32
      %s62 = ssub.s32 %s21, %s28
      %s63 = sor.u32 %s61, %s62
      %p64 = scmp.eq.s32.totalorder %s63, 0
      %s66 = sadd.s32 %s65, 1
      %s67 = scalar_select %p64, %s65, %s66
      %p70 = pneg %p64
      %p71 = scmp.eq.s32.totalorder %s13, 3
      %p72 = por %p70, %p71
      %p73 = scmp.ne.s32.totalorder %s65, %s68
      %p74 = scmp.eq.s32.totalorder %s13, 0
      %p75 = por %p73, %p74
      %p76 = scmp.ne.s32.totalorder %s65, %s68
      %p77 = scmp.eq.s32.totalorder %s18, 3
      %p78 = por %p76, %p77
      %p79 = scmp.ne.s32.totalorder %s68, %s69
      %p80 = scmp.eq.s32.totalorder %s18, 0
      %p81 = por %p79, %p80
      %p82 = scmp.ne.s32.totalorder %s68, %s69
      %p83 = scmp.eq.s32.totalorder %s19, 3
      %p84 = por %p82, %p83
      %p86 = scmp.ne.s32.totalorder %s69, %s85
      %p87 = scmp.eq.s32.totalorder %s19, 0
      %p88 = por %p86, %p87
      %p89 = scmp.le.s32.totalorder 1, %s13
      %p90 = scmp.lt.s32.totalorder %s13, 5
      %p91 = pnand %p89, %p90
      %p92 = pneg %p91
      // Predicated region
      $region9: #{tpu_custom_call.1} parent=5 // pred_check
        _
      $region10: #{tpu_custom_call.1} parent=5 // pred_check_branch
        %94 = sbr.rel (%p91) target = $region12
      $region11: #{tpu_custom_call.1} parent=5 // pred_region
        %s95 = ssub.s32 %s13, 1
      $region12: #{tpu_custom_call.1} parent=5 // pred_fallthru
        _
      %p96 = scmp.lt.s32.totalorder %s13, 4
      // Predicated region
      $region13: #{tpu_custom_call.1} parent=5 // pred_check
        %p97 = pneg %p96
      $region14: #{tpu_custom_call.1} parent=5 // pred_check_branch
        %99 = sbr.rel (%p97) target = $region16
      $region15: #{tpu_custom_call.1} parent=5 // pred_region
        // Predicated region
        $region17: #{tpu_custom_call.1} parent=15 // pred_check
          %p100 = pneg %p47
        $region18: #{tpu_custom_call.1} parent=15 // pred_check_branch
          %102 = sbr.rel (%p100) target = $region20
        $region19: #{tpu_custom_call.1} parent=15 // pred_region
          %s103 = sand.u32 %s37, 1
          %s104 = scalar_lea.sflag [#allocation3], %s103
          %s105 = sand.u32 %s37, 1
          %s106 = smul.addr %s105, 32
          %s107 = scalar_lea.vmem [#allocation2], %s106
          %109 = vsyncadd %s104, 0
          %s110 = smul.addr %s20, 8
          %s111 = sadd.s32 %s21, %s110
          %s112 = smul.addr %s111, 8
          %s113 = scalar_lea.hbm %s0, %s112
          %s114 = sshll.u32 %s113, 4
          %s115 = int_to_ptr.hbm [resolvable:$true] %s114
          %s116 = sshll.u32 %s107, 4
          %s117 = int_to_ptr.vmem [resolvable:$true] %s116
          %122 = dma.hbm_to_vmem [thread:$0]  %s115, 512, %s117, %s104, 256, 128, 8
        $region20: #{tpu_custom_call.1} parent=15 // pred_fallthru
          _
      $region16: #{tpu_custom_call.1} parent=5 // pred_fallthru
        _
      %p123 = scmp.le.s32.totalorder 1, %s13
      %p124 = scmp.lt.s32.totalorder %s13, 5
      %p125 = pnand %p123, %p124
      %p126 = pneg %p125
      // Predicated region
      $region21: #{tpu_custom_call.1} parent=5 // pred_check
        _
      $region22: #{tpu_custom_call.1} parent=5 // pred_check_branch
        %128 = sbr.rel (%p125) target = $region24
      $region23: #{tpu_custom_call.1} parent=5 // pred_region
        %s129 = ssub.s32 %s13, 1
        %s130 = sand.u32 %s40, 1
        %s131 = scalar_lea.sflag [#allocation3], %s130
        %s132 = sand.u32 %s40, 1
        %s133 = smul.addr %s132, 32
        %s134 = scalar_lea.vmem [#allocation2], %s133
        // Predicated region
        $region25: #{tpu_custom_call.1} parent=23 // pred_check
          %p135 = pneg %p53
        $region26: #{tpu_custom_call.1} parent=23 // pred_check_branch
          %137 = sbr.rel (%p135) target = $region28
        $region27: #{tpu_custom_call.1} parent=23 // pred_region
          %139 = dma.done %s131, 512
        $region28: #{tpu_custom_call.1} parent=23 // pred_fallthru
          _
        %s140 = sand.u32 %s40, 1
        %s141 = scalar_lea.sflag [#allocation3], %s140
        %s142 = sand.u32 %s40, 1
        %s143 = smul.addr %s142, 32
        %s144 = scalar_lea.vmem [#allocation2], %s143
        %p145 = pneg %p53
        %p146 = pneg %p50
        %p147 = pneg %p81
        %p148 = pneg %p78
        %s149 = sand.u32 %s68, 1
        %s150 = scalar_lea.sflag [#allocation4], %s149
        %s151 = sand.u32 %s68, 1
        %s152 = smul.addr %s151, 8
        %s153 = scalar_lea.vmem [#allocation5], %s152
        %v154 = vld [vmem:[%s134] sm:$0xff]
        %s155 = scalar_lea.vmem %s134, 8 [#allocation2]
        %v156 = vld [vmem:[%s155] sm:$0xff]
        %s157 = scalar_lea.vmem %s134, 16 [#allocation2]
        %v158 = vld [vmem:[%s157] sm:$0xff]
        %s159 = scalar_lea.vmem %s134, 24 [#allocation2]
        %v160 = vld [vmem:[%s159] sm:$0xff]
        %162 = vrot.lane.b32.xlu0 %v156, 16
        %v163 = vpop.permute.xlu0 %162
        %166 = vrot.lane.b32.xlu0 %v158, 32
        %v167 = vpop.permute.xlu0 %166
        %170 = vrot.lane.b32.xlu0 %v160, 48
        %v171 = vpop.permute.xlu0 %170
        %vm173 = vcmask 130048
        %v174 = vsel %vm173, %v154, %v163
        %vm175 = vcmask 261120
        %v176 = vsel %vm175, %v174, %v167
        %vm177 = vcmask 392192
        %v178 = vsel %vm177, %v176, %v171
        %v179 = vmul.f32 %v178, 0.5
        %vm180 = vcmask 523264
        %181 = vst.msk [vmem:[%s153] sm:$0xff] %vm180, %v179
        %183 = vrot.lane.b32.xlu0 %v179, 64
        %v184 = vpop.permute.xlu0 %183
        %vm186 = vcmask 1048064
        %187 = vst.msk [vmem:[%s153] sm:$0xff] %vm186, %v184
        %s188 = sand.u32 %s68, 1
        %s189 = scalar_lea.sflag [#allocation4], %s188
        %s190 = sand.u32 %s68, 1
        %s191 = smul.addr %s190, 8
        %s192 = scalar_lea.vmem [#allocation5], %s191
        // Predicated region
        $region29: #{tpu_custom_call.1} parent=23 // pred_check
          %p193 = pneg %p78
        $region30: #{tpu_custom_call.1} parent=23 // pred_check_branch
          %195 = sbr.rel (%p193) target = $region32
        $region31: #{tpu_custom_call.1} parent=23 // pred_region
          %197 = vsyncadd %s189, 0
          %s198 = smul.addr %s22, 2
          %s199 = sadd.s32 %s23, %s198
          %s200 = smul.addr %s199, 8
          %s201 = scalar_lea.hbm %s1, %s200
          %s203 = sshll.u32 %s192, 4
          %s204 = int_to_ptr.vmem [resolvable:$true] %s203
          %s205 = sshll.u32 %s201, 4
          %s206 = int_to_ptr.hbm [resolvable:$true] %s205
          %208 = dma.vmem_to_hbm [thread:$0]  %s204, 128, %s206, %s189
        $region32: #{tpu_custom_call.1} parent=23 // pred_fallthru
          _
      $region24: #{tpu_custom_call.1} parent=5 // pred_fallthru
        _
      %p209 = scmp.le.s32.totalorder 2, %s13
      // Predicated region
      $region33: #{tpu_custom_call.1} parent=5 // pred_check
        %p210 = pneg %p209
      $region34: #{tpu_custom_call.1} parent=5 // pred_check_branch
        %212 = sbr.rel (%p210) target = $region36
      $region35: #{tpu_custom_call.1} parent=5 // pred_region
        %s213 = ssub.s32 %s13, 2
        // Predicated region
        $region37: #{tpu_custom_call.1} parent=35 // pred_check
          %p214 = pneg %p84
        $region38: #{tpu_custom_call.1} parent=35 // pred_check_branch
          %216 = sbr.rel (%p214) target = $region40
        $region39: #{tpu_custom_call.1} parent=35 // pred_region
          %s217 = sand.u32 %s69, 1
          %s218 = scalar_lea.sflag [#allocation4], %s217
          %s219 = sand.u32 %s69, 1
          %s220 = smul.addr %s219, 8
          %s221 = scalar_lea.vmem [#allocation5], %s220
          %223 = dma.done %s218, 128
        $region40: #{tpu_custom_call.1} parent=35 // pred_fallthru
          _
      $region36: #{tpu_custom_call.1} parent=5 // pred_fallthru
        _
    $region6: #{tpu_custom_call.1} parent=1 // loop_footer
      %s17 = sadd.s32 1, %s13
    $region7: #{tpu_custom_call.1} parent=1 // loop_footer_branch
      %12 = sbr.rel target = $region3
    $region8: #{tpu_custom_call.1} parent=1 // loop_exit
      _
    %224 = vsyncpa [#allocation3], 1
    %s225 = scalar_lea.sflag [#allocation3], 1
    %226 = vsyncpa %s225, 1
    %227 = vsyncpa [#allocation4], 1
    %s228 = scalar_lea.sflag [#allocation4], 1
    %229 = vsyncpa %s228, 1

</llo_original>
